<compile_context>
chip_gen: v7x
topology: tpu7x:2x2x1
jax: 0.10.0
libtpu: 0.0.40
codegen_flags: <defaults>
</compile_context>

<pallas_src>
import math

import jax
import jax.numpy as jnp
from jax.experimental import pallas as pl
from jax.experimental.pallas import tpu as pltpu

_LANES = 128
_VMEM_LIMIT = 32 * 1024 * 1024


def _round_up(x: int, m: int) -> int:
    return (x + m - 1) // m * m


def _num_tensorcores() -> int:
    """TensorCores one Pallas call's "parallel" grid axis can shard across.

    Getting this wrong only costs one extra (or one missing) grid step, never
    correctness, so the query is defensive."""
    try:
        info = pltpu.get_tpu_info()
        for attr in ("num_cores", "num_tensorcores", "tensorcore_count", "core_count"):
            n = getattr(info, attr, None)
            if n is not None:
                try:
                    n = int(n)
                except Exception:
                    continue
                if n > 0:
                    return max(1, min(2, n))
    except Exception:
        pass
    try:
        kind = jax.devices()[0].device_kind.lower()
    except Exception:
        return 1
    if "v5 lite" in kind or "v5e" in kind or "v6" in kind:
        return 1                      # v5e / v6e: one TensorCore per chip
    if "v7" in kind or "7x" in kind or "v4" in kind or "v5p" in kind or "v5" in kind:
        return 2                      # v4 / v5p megacore, v7x: two TensorCores
    return 1


def _pick_tile(n_rows: int, max_tile_rows: int, align: int, n_cores: int) -> int:
    """Rows of the (rows, 128) output slab handled per grid step.

    - multiple of `align` (sublane rule x lane-pattern period) unless it covers the
      whole array (block dim == full dim is always legal),
    - as large as possible (per-grid-step pipeline overhead ~0.35us),
    - single-TensorCore parts (v5e/v6e): one maximal tile -- a "parallel" grid can't
      shard there, so extra steps are pure overhead,
    - multi-TensorCore parts (v4/v5p/v7x): even, balanced step count so both cores
      get equal store work.
    """
    max_tile = max(align, max_tile_rows // align * align)
    if n_rows <= align:
        return n_rows
    if n_cores <= 1:
        return n_rows if n_rows <= max_tile else max_tile
    k = 1
    while True:
        tile = _round_up(pl.cdiv(n_rows, 2 * k), align)
        if tile <= max_tile:
            return tile
        k += 1


def _affine_rows_kernel(row_mul: int):
    """out[r, c] = ((base + r) * row_mul) * scale[., c] + bias[., c].

    scale/bias blocks are either (1, 128) (broadcast over sublanes) or pre-tiled
    (tile_rows, 128) pattern tables; the only in-kernel work per vreg is one iota,
    one int mul/add, one convert and one fma -- all hidden under the store DMA."""

    def kernel(scale_ref, bias_ref, out_ref):
        tile_rows = out_ref.shape[0]
        base = pl.program_id(0) * tile_rows
        r = jax.lax.broadcasted_iota(jnp.int32, out_ref.shape, 0)
        row_f = ((base + r) * row_mul).astype(jnp.float32)
        out_ref[...] = row_f * scale_ref[...] + bias_ref[...]

    return kernel


def _affine_call(scale: jax.Array, bias: jax.Array, n_rows: int, tile_rows: int,
                 *, row_mul: int) -> jax.Array:
    t_rows = int(scale.shape[0])
    grid = (pl.cdiv(n_rows, tile_rows),)
    return pl.pallas_call(
        _affine_rows_kernel(row_mul),
        out_shape=jax.ShapeDtypeStruct((n_rows, _LANES), jnp.float32),
        grid_spec=pltpu.PrefetchScalarGridSpec(
            num_scalar_prefetch=0,
            grid=grid,
            in_specs=[pl.BlockSpec((t_rows, _LANES), lambda i: (0, 0)),
                      pl.BlockSpec((t_rows, _LANES), lambda i: (0, 0))],
            out_specs=pl.BlockSpec((tile_rows, _LANES), lambda i: (i, 0)),
        ),
        compiler_params=pltpu.CompilerParams(
            dimension_semantics=("parallel",),
            vmem_limit_bytes=_VMEM_LIMIT),
    )(scale, bias)


def _rowmajor_rotary_kernel(inv_ref, out_ref):
    """Exactness fallback layout (tile_s, half); only used for unrealistic dims."""
    tile_s = out_ref.shape[0]
    base = pl.program_id(0) * tile_s
    seq = (jax.lax.broadcasted_iota(jnp.int32, out_ref.shape, 0) + base).astype(jnp.float32)
    out_ref[...] = seq * inv_ref[...]


def make_inv_freq(dim: int, theta: float = 10000.0) -> jax.Array:
    # Exactly the module's __init__ (deterministic from dim/theta).
    return 1.0 / (theta ** (jnp.arange(0, dim, 2, dtype=jnp.float32) / dim))


def vision_rotary_embedding(seqlen: int, inv_freq: jax.Array, *,
                            max_tile_rows: int = 8192,
                            min_pallas_elems: int = 65536) -> jax.Array:
    """Pallas equivalent of VisionRotaryEmbedding.forward(seqlen) -> (seqlen, dim//2) f32."""
    half = int(inv_freq.shape[0])
    assert seqlen >= 1
    inv_freq = inv_freq.astype(jnp.float32)

    # Small-problem bypass: launch + pipeline prologue would dominate; a fused XLA
    # outer is as fast and avoids a dedicated HBM round trip.
    if seqlen * half < min_pallas_elems:
        return jnp.outer(jnp.arange(seqlen, dtype=jnp.float32), inv_freq)

    n_cores = _num_tensorcores()
    cols = jnp.arange(_LANES, dtype=jnp.int32)

    if half <= _LANES and _LANES % half == 0:
        # --- packed lane-dense path: g consecutive seq rows per 128-lane row ---
        assert seqlen + _LANES < (1 << 24), "f32 positions exact only up to 2^24"
        g = _LANES // half
        n_rows = pl.cdiv(seqlen, g)
        tile_rows = _pick_tile(n_rows, max_tile_rows, 8, n_cores)
        scale = inv_freq[cols % half].reshape(1, _LANES)
        bias = (cols // half).astype(jnp.float32).reshape(1, _LANES) * scale
        packed = _affine_call(scale, bias, n_rows, tile_rows, row_mul=g)
        out = packed.reshape(n_rows * g, half)       # same row-major bytes: free reshape
        if n_rows * g == seqlen:
            return out
        # TODO(synk): padded-tail slice costs one extra HBM pass; fuse into the consumer
        # (or pad seqlen at the caller) in a full model.
        return out[:seqlen]

    if half <= 96:
        # --- flat-packed lane-dense path (Qwen2-VL: half=20) ---
        total = seqlen * half
        assert total + _LANES < (1 << 24), "f32 flat positions exact only up to 2^24"
        L = half // math.gcd(half, _LANES)            # lane-pattern period in packed rows
        align = (8 * L) // math.gcd(8, L)             # lcm(8, L): layout rule x pattern phase
        n_rows = pl.cdiv(total, _LANES)
        tile_rows = _pick_tile(n_rows, min(max_tile_rows, 4096), align, n_cores)
        rr = jnp.arange(tile_rows, dtype=jnp.int32).reshape(-1, 1)
        col = (rr * _LANES + cols.reshape(1, -1)) % half          # (tile_rows, 128)
        inv_col = inv_freq[col]
        scale = inv_col / float(half)
        bias = (cols.reshape(1, -1) - col).astype(jnp.float32) * scale
        flat = _affine_call(scale, bias, n_rows, tile_rows, row_mul=_LANES)
        flat = flat.reshape(-1)
        if n_rows * _LANES != total:
            # TODO(synk): unaligned tail -> one extra HBM pass; fuse into the consumer.
            flat = flat[:total]
        return flat.reshape(seqlen, half)

    # --- rare fallback (half > 96 and not a divisor of 128): exact row-major layout.
    # Masked stores, but preserves bit-exactness for dims where the affine split's
    # cancellation could exceed 1e-6 relative error.  Not hit by realistic models.
    assert seqlen + _LANES < (1 << 24)
    tile_s = _pick_tile(seqlen, max_tile_rows, 8, n_cores)
    grid = (pl.cdiv(seqlen, tile_s),)
    return pl.pallas_call(
        _rowmajor_rotary_kernel,
        out_shape=jax.ShapeDtypeStruct((seqlen, half), jnp.float32),
        grid_spec=pltpu.PrefetchScalarGridSpec(
            num_scalar_prefetch=0,
            grid=grid,
            in_specs=[pl.BlockSpec((1, half), lambda i: (0, 0))],
            out_specs=pl.BlockSpec((tile_s, half), lambda i: (i, 0)),
        ),
        compiler_params=pltpu.CompilerParams(
            dimension_semantics=("parallel",),
            vmem_limit_bytes=_VMEM_LIMIT),
    )(inv_freq.reshape(1, half))


if __name__ == "__main__":
    _ = jax.random.PRNGKey(0)   # inputs are deterministic from (dim, theta); key unused

    theta = 10000.0

    def check(seqlen, dim, **kw):
        inv = make_inv_freq(dim, theta)
        out = jax.block_until_ready(vision_rotary_embedding(seqlen, inv, **kw))
        ref = jnp.outer(jnp.arange(seqlen, dtype=jnp.float32), inv)
        assert out.shape == (seqlen, dim // 2) and out.dtype == jnp.float32, (seqlen, dim)
        assert jnp.allclose(out, ref, atol=1e-6, rtol=1e-6), (seqlen, dim)

    # Small shapes consistent with the module; min_pallas_elems=0 forces the Pallas path.
    check(8, 32, min_pallas_elems=0)     # half=16 -> packed lane-dense path (half | 128)
    check(50, 32, min_pallas_elems=0)    # unaligned tail -> cdiv grid + wrapper slice
    check(8, 40, min_pallas_elems=0)     # Qwen2-VL vision dim: half=20 -> flat-packed path
    check(50, 40, min_pallas_elems=0)    # flat-packed, unaligned tail
    check(1024, 40, min_pallas_elems=0)  # flat-packed, multiple pattern periods / >=2 steps on v7x
    check(300, 48, min_pallas_elems=0)   # half=24 (L=3) -> flat-packed path
    check(16, 200, min_pallas_elems=0)   # half=100 -> exactness fallback layout
    check(8, 32)                         # below threshold -> fused XLA outer bypass

    print("KERNEL_OK")
</pallas_src>

<mosaic_0001>
module attributes {stable_mosaic.version = 11 : i64} {
  func.func @kernel(%arg0: i32, %arg1: memref<1x128xf32, #tpu.memory_space<vmem>>, %arg2: memref<1x128xf32, #tpu.memory_space<vmem>>, %arg3: memref<1x128xf32, #tpu.memory_space<vmem>>) attributes {dimension_semantics = [#tpu.dimension_semantics<parallel>], iteration_bounds = array<i64: 1>, scalar_prefetch = 0 : i64, scratch_operands = 0 : i64, tpu.core_type = #tpu.core_type<tc>, window_params = [{pipeline_mode = #tpu.pipeline_mode<synchronous>, transform_indices = @transform_0, window_bounds = array<i64: 1, 128>}, {pipeline_mode = #tpu.pipeline_mode<synchronous>, transform_indices = @transform_1, window_bounds = array<i64: 1, 128>}, {transform_indices = @transform_2, window_bounds = array<i64: 1, 128>}]} {
    %c1_i32 = arith.constant 1 : i32
    %0 = arith.muli %arg0, %c1_i32 : i32
    %1 = tpu.iota {dimensions = array<i32: 0>} : vector<1x128xi32>
    %2 = vector.broadcast %0 : i32 to vector<1x128xi32>
    %3 = arith.addi %2, %1 : vector<1x128xi32>
    %c8_i32 = arith.constant 8 : i32
    %4 = vector.broadcast %c8_i32 : i32 to vector<1x128xi32>
    %5 = arith.muli %3, %4 : vector<1x128xi32>
    %6 = arith.sitofp %5 : vector<1x128xi32> to vector<1x128xf32>
    %c0 = arith.constant 0 : index
    %c0_0 = arith.constant 0 : index
    %7 = vector.load %arg1[%c0, %c0_0] : memref<1x128xf32, #tpu.memory_space<vmem>>, vector<1x128xf32>
    %8 = arith.mulf %6, %7 : vector<1x128xf32>
    %c0_1 = arith.constant 0 : index
    %c0_2 = arith.constant 0 : index
    %9 = vector.load %arg2[%c0_1, %c0_2] : memref<1x128xf32, #tpu.memory_space<vmem>>, vector<1x128xf32>
    %10 = arith.addf %8, %9 : vector<1x128xf32>
    %c0_3 = arith.constant 0 : index
    %c0_4 = arith.constant 0 : index
    %11 = vector.load %arg3[%c0_3, %c0_4] : memref<1x128xf32, #tpu.memory_space<vmem>>, vector<1x128xf32>
    tpu.vector_store %arg3[%c0_3, %c0_4], %10 {strides = array<i32>} : memref<1x128xf32, #tpu.memory_space<vmem>>, vector<1x128xf32>,
    return
  }
  func.func @transform_0(%arg0: i32) -> (i32, i32) {
    %c0_i32 = arith.constant 0 : i32
    %c0_i32_0 = arith.constant 0 : i32
    %c0_i32_1 = arith.constant 0 : i32
    return %c0_i32, %c0_i32_0 : i32, i32
  }
  func.func @transform_1(%arg0: i32) -> (i32, i32) {
    %c0_i32 = arith.constant 0 : i32
    %c0_i32_0 = arith.constant 0 : i32
    %c0_i32_1 = arith.constant 0 : i32
    return %c0_i32, %c0_i32_0 : i32, i32
  }
  func.func @transform_2(%arg0: i32) -> (i32, i32) {
    %c0_i32 = arith.constant 0 : i32
    %c0_i32_0 = arith.constant 0 : i32
    return %arg0, %c0_i32 : i32, i32
  }
}

</mosaic_0001>

<llo_original>
// kernel: tpu_custom_call.1
$region0: #{tpu_custom_call.1}
  #allocation0 [shape = 'u32[]', space=smem, size = 0x4, offset = 0x4, fixed_abs, tag = 'smem constant byte address 0x4 - core index']
  #allocation1 [shape = 'u32[144,128]{1,0:T(1,128)}', space=vmem, size = 0x12000, scoped, tag = 'internal scratch']
  %s0 = inlined_call_operand.hbm [shape: f32[1,128], index: 0, kind: input, shape index: {}]
  %s1 = inlined_call_operand.vmem [shape: f32[1,128], index: 1, kind: input, shape index: {}]
  %s2 = inlined_call_operand.hbm [shape: f32[1,128], index: 2, kind: output, shape index: {}]
  %s3 = sld [smem:[#allocation0]]
  $region22: #{tpu_custom_call.1} parent=0
    _
  %s5 = ssub.s32 1, %s3
  %s6 = scalar_select 0, %s5, %s3
  $region1: #{tpu_custom_call.1} parent=0
    #allocation2 [shape = 'u8[512]{0}', space=vmem, size = 0x400, scoped, tag = 'input window, operand 0, single buffered']
    #allocation3 [shape = 's32[1]{0}', space=sflag, size = 0x4, scoped, tag = 'scoped memory for tpu_custom_call.1']
    #allocation4 [shape = 's32[1]{0}', space=sflag, size = 0x4, scoped, tag = 'scoped memory for tpu_custom_call.1']
    #allocation5 [shape = 'u8[512]{0}', space=vmem, size = 0x400, scoped, tag = 'output window, operand 0, single buffered']
    %7 = vsyncpa [#allocation3], 0
    %8 = vsyncpa [#allocation4], 0
    // Predicated region
    $region2: #{tpu_custom_call.1} parent=1 // pred_check
      _
    $region3: #{tpu_custom_call.1} parent=1 // pred_check_branch
      %10 = sbr.rel (0) target = $region5
    $region4: #{tpu_custom_call.1} parent=1 // pred_region
      %s12 = ssub.s32 16, 16
      %13 = vsyncadd [#allocation3], %s12
      %s15 = sshll.u32 [#allocation2], 4
      %s16 = int_to_ptr.vmem [resolvable:$true] %s15
      %18 = dma.hbm_to_vmem [thread:$0]  %s0, 16, %s16, [#allocation3]
    $region5: #{tpu_custom_call.1} parent=1 // pred_fallthru
      _
    // Predicated region
    $region6: #{tpu_custom_call.1} parent=1 // pred_check
      _
    $region7: #{tpu_custom_call.1} parent=1 // pred_check_branch
      %20 = sbr.rel (0) target = $region9
    $region8: #{tpu_custom_call.1} parent=1 // pred_region
      _
    $region9: #{tpu_custom_call.1} parent=1 // pred_fallthru
      _
    // Predicated region
    $region10: #{tpu_custom_call.1} parent=1 // pred_check
      _
    $region11: #{tpu_custom_call.1} parent=1 // pred_check_branch
      %22 = sbr.rel (0) target = $region13
    $region12: #{tpu_custom_call.1} parent=1 // pred_region
      %23 = dma.done [#allocation3], 16
    $region13: #{tpu_custom_call.1} parent=1 // pred_fallthru
      _
    %v24 = vlaneseq
    %v25 = vshrl.u32 %v24, 7
    %v26 = vstv 0
    %v27 = vadd.s32 %v26, %v25
    %v28 = vmul.u32 %v27, 8
    %v29 = vcvt.s32.f32 %v28
    %v30 = vld [vmem:[#allocation2] sm:$0x1]
    %v31 = vmul.f32 %v29, %v30
    %v32 = vld [vmem:[%s1] sm:$0x1]
    %v33 = vadd.f32 %v31, %v32
    %34 = vst [vmem:[#allocation5] sm:$0x1] %v33
    // Predicated region
    $region14: #{tpu_custom_call.1} parent=1 // pred_check
      _
    $region15: #{tpu_custom_call.1} parent=1 // pred_check_branch
      %36 = sbr.rel (0) target = $region17
    $region16: #{tpu_custom_call.1} parent=1 // pred_region
      %s38 = ssub.s32 16, 16
      %39 = vsyncadd [#allocation4], %s38
      %s41 = sshll.u32 [#allocation5], 4
      %s42 = int_to_ptr.vmem [resolvable:$true] %s41
      %44 = dma.vmem_to_hbm [thread:$0]  %s42, 16, %s2, [#allocation4]
    $region17: #{tpu_custom_call.1} parent=1 // pred_fallthru
      _
    // Predicated region
    $region18: #{tpu_custom_call.1} parent=1 // pred_check
      _
    $region19: #{tpu_custom_call.1} parent=1 // pred_check_branch
      %46 = sbr.rel (0) target = $region21
    $region20: #{tpu_custom_call.1} parent=1 // pred_region
      %47 = dma.done [#allocation4], 16
    $region21: #{tpu_custom_call.1} parent=1 // pred_fallthru
      _
    %48 = vsyncpa [#allocation3], 1
    %49 = vsyncpa [#allocation4], 1

</llo_original>
